<compile_context>
chip_gen: v5e
topology: v5e:2x2
jax: 0.10.0
libtpu: 0.0.40
codegen_flags: <defaults>
</compile_context>

<pallas_src>
import math

import jax
import jax.numpy as jnp
from jax.experimental import pallas as pl
from jax.experimental.pallas import tpu as pltpu


def _round_up(v: int, m: int) -> int:
    return ((v + m - 1) // m) * m


# Constant-index-map operands larger than this request single buffering so the
# default 2-deep pipeline does not double their VMEM footprint (v7x: 64 MiB).
_SINGLE_BUFFER_BYTES = 512 * 1024


def _resident_spec(shape, nbytes):
    """BlockSpec for an operand loaded once and kept VMEM-resident."""
    if nbytes >= _SINGLE_BUFFER_BYTES:
        return pl.BlockSpec(shape, lambda i, k: (0, 0), pipeline_mode=pl.Buffered(1))
    return pl.BlockSpec(shape, lambda i, k: (0, 0))


def _make_gcn_kernel(apply_w, has_bias, mask_cols, m_resident, tk, n_valid):
    """Kernel body for a static configuration.

    Ref order: adj, M (= X or precomputed support), [W], [bias], out, acc.
    """

    def kernel(*refs):
        it = iter(refs)
        adj_ref = next(it)
        m_ref = next(it)
        w_ref = next(it) if apply_w else None
        b_ref = next(it) if has_bias else None
        o_ref = next(it)
        acc_ref = next(it)

        k = pl.program_id(1)

        @pl.when(k == 0)
        def _():
            acc_ref[...] = jnp.zeros_like(acc_ref)

        adj_t = adj_ref[...]
        if mask_cols:
            # The last adj column tile sticks out past N: zero the OOB columns
            # (their contents are unspecified). The matching M rows are padded
            # zeros, so masked columns contribute exactly 0.
            cols = k * tk + jax.lax.broadcasted_iota(jnp.int32, adj_t.shape, 1)
            adj_t = jnp.where(cols < n_valid, adj_t, jnp.zeros_like(adj_t))

        if m_resident:
            # M is fully VMEM-resident; slice out this reduction strip.
            m_t = m_ref[pl.ds(pl.multiple_of(k * tk, tk), tk), :]
        else:
            m_t = m_ref[...]

        acc_ref[...] += jnp.dot(adj_t, m_t, preferred_element_type=jnp.float32)

        @pl.when(k == pl.num_programs(1) - 1)
        def _():
            out = acc_ref[...]
            if apply_w:
                out = jnp.dot(out, w_ref[...], preferred_element_type=jnp.float32)
            if has_bias:
                out = out + b_ref[...]
            o_ref[...] = out.astype(o_ref.dtype)

    return kernel


def graph_convolution(x, adj, weight, bias=None, *, tile_n=512, tile_k=1024,
                      m_resident_max_bytes=4 * 1024 * 1024):
    """GCN layer forward: adj @ (x @ weight) [+ bias].

    x:      [N, F_in]     float32
    adj:    [N, N]        dense adjacency. Pass it in bfloat16 to halve the
                          dominant HBM traffic (numerics knob; f32 accumulate).
    weight: [F_in, F_out] float32
    bias:   [F_out] or None
    """
    n, f_in = x.shape
    f_in_w, f_out = weight.shape
    assert f_in_w == f_in, "weight shape mismatch"
    assert adj.shape == (n, n), "adj must be [N, N]"

    out_dtype = x.dtype
    has_bias = bias is not None
    # (adj @ X) @ W needs fewer N^2-scale flops/bytes when F_in <= F_out;
    # otherwise precompute support = X @ W once (XLA) and stream adj @ support.
    reassociate = f_in <= f_out
    apply_w = reassociate

    f_in_p = _round_up(f_in, 128)
    f_out_p = _round_up(f_out, 128)
    f_p = f_in_p if reassociate else f_out_p

    # ---- adjacency-column (reduction) tile: multiple of 128 or the full N ---
    tile_k = max(128, _round_up(tile_k, 128))
    if n % 128 == 0:
        tk = min(tile_k, n)
    elif n < tile_k:
        tk = n                       # single full-width tile, no masking needed
    else:
        tk = tile_k                  # ragged last tile -> masked in-kernel
    grid_k = int(pl.cdiv(n, tk))
    mask_cols = (n % tk) != 0
    m_rows_p = grid_k * tk           # only the small M operand is zero-padded

    # ---- M operand: X (reassociate) or precomputed support = X @ W ----------
    if reassociate:
        m_src, m_cols = x, f_in
    else:
        m_src, m_cols = jnp.dot(x, weight), f_out    # hoisted out of the kernel
    m_dtype = (adj.dtype
               if jnp.dtype(adj.dtype).itemsize < jnp.dtype(out_dtype).itemsize
               else out_dtype)
    m_p = jnp.zeros((m_rows_p, f_p), m_dtype).at[:n, :m_cols].set(
        m_src.astype(m_dtype))
    m_nbytes = m_rows_p * f_p * jnp.dtype(m_dtype).itemsize
    m_resident = m_nbytes <= m_resident_max_bytes

    # ---- row tile: multiple of 8; >=2 row tiles when possible (v7x megacore) -
    if n < 8:
        tn = n
    else:
        tn_cap = max(8, _round_up((n + 1) // 2, 8))
        tn = min(_round_up(max(tile_n, 8), 8), tn_cap)
        if not m_resident:
            # Streamed strip is re-DMA'd once per row tile; tn >= f_p keeps that
            # traffic <= the adj traffic itself.
            tn = min(max(tn, f_p), tn_cap)
    grid_i = int(pl.cdiv(n, tn))

    # ---- inputs / specs ------------------------------------------------------
    inputs = [adj, m_p]
    in_specs = [pl.BlockSpec((tn, tk), lambda i, k: (i, k))]      # adj tile
    if m_resident:
        in_specs.append(_resident_spec((m_rows_p, f_p), m_nbytes))
    else:
        in_specs.append(pl.BlockSpec((tk, f_p), lambda i, k: (k, 0)))
    if apply_w:
        w_p = jnp.zeros((f_in_p, f_out_p), out_dtype).at[:f_in, :f_out].set(weight)
        inputs.append(w_p)
        in_specs.append(_resident_spec((f_in_p, f_out_p),
                                       f_in_p * f_out_p * jnp.dtype(out_dtype).itemsize))
    if has_bias:
        b_p = jnp.zeros((1, f_out_p), out_dtype).at[0, :f_out].set(
            bias.astype(out_dtype))
        inputs.append(b_p)
        in_specs.append(pl.BlockSpec((1, f_out_p), lambda i, k: (0, 0)))

    # ---- VMEM budget / cost --------------------------------------------------
    adj_item = jnp.dtype(adj.dtype).itemsize
    out_item = jnp.dtype(out_dtype).itemsize
    vmem_need = (
        2 * tn * tk * adj_item                                    # adj dbl buffer
        + (m_nbytes if m_resident
           else 2 * tk * f_p * jnp.dtype(m_dtype).itemsize)       # M strip
        + (2 * f_in_p * f_out_p * out_item if apply_w else 0)     # W
        + 2 * tn * f_out_p * out_item                             # out dbl buffer
        + tn * f_p * 4                                            # f32 accumulator
        + (2 * f_out_p * out_item if has_bias else 0)
    )
    vmem_limit = int(min(64 * 1024 * 1024,
                         max(32 * 1024 * 1024, int(1.3 * vmem_need) + (2 << 20))))

    flops = 2 * n * n * (f_in if reassociate else f_out)
    if reassociate:
        flops += 2 * n * f_in * f_out                             # acc @ W
    m_reads = 1 if m_resident else grid_i
    bytes_accessed = int(
        n * n * adj_item
        + m_reads * m_nbytes
        + (f_in_p * f_out_p * out_item if apply_w else 0)
        + n * f_out_p * out_item
        + (f_out_p * out_item if has_bias else 0)
    )
    cost = pl.CostEstimate(flops=int(flops), transcendentals=0,
                           bytes_accessed=bytes_accessed)

    out_p = pl.pallas_call(
        _make_gcn_kernel(apply_w, has_bias, mask_cols, m_resident, tk, n),
        out_shape=jax.ShapeDtypeStruct((n, f_out_p), out_dtype),
        grid_spec=pltpu.PrefetchScalarGridSpec(
            num_scalar_prefetch=0,
            grid=(grid_i, grid_k),
            in_specs=in_specs,
            out_specs=pl.BlockSpec((tn, f_out_p), lambda i, k: (i, 0)),
            scratch_shapes=[pltpu.VMEM((tn, f_p), jnp.float32)],
        ),
        compiler_params=pltpu.CompilerParams(
            dimension_semantics=("parallel", "arbitrary"),
            vmem_limit_bytes=vmem_limit,
        ),
        cost_estimate=cost,
    )(*inputs)

    return out_p[:, :f_out] if f_out_p != f_out else out_p


def _reference(x, adj, weight, bias):
    out = adj.astype(jnp.float32) @ (x @ weight)
    if bias is not None:
        out = out + bias
    return out


if __name__ == "__main__":
    key = jax.random.PRNGKey(0)

    def make_case(key, n, f_in, f_out, with_bias):
        k_x, k_adj, k_w, k_b = jax.random.split(key, 4)
        x = jax.random.normal(k_x, (n, f_in), dtype=jnp.float32)
        # Symmetric, row-normalized adjacency (dense stand-in for torch.spmm).
        a = (jax.random.uniform(k_adj, (n, n)) > 0.5).astype(jnp.float32)
        a = jnp.maximum(a, a.T) + jnp.eye(n, dtype=jnp.float32)
        adj = a / jnp.sum(a, axis=1, keepdims=True)
        # reset_parameters(): uniform(-stdv, stdv), stdv = 1/sqrt(out_features).
        stdv = 1.0 / math.sqrt(f_out)
        weight = jax.random.uniform(k_w, (f_in, f_out), minval=-stdv, maxval=stdv,
                                    dtype=jnp.float32)
        bias = (jax.random.uniform(k_b, (f_out,), minval=-stdv, maxval=stdv,
                                   dtype=jnp.float32) if with_bias else None)
        return x, adj, weight, bias

    k1, k2, k3, k4, k5 = jax.random.split(key, 5)

    # Case 1: toy module shapes (N=8 nodes, 16 -> 32 features), bias,
    # single tile on both axes, reassociated path.
    x, adj, w, b = make_case(k1, 8, 16, 32, with_bias=True)
    out = jax.block_until_ready(graph_convolution(x, adj, w, b))
    assert out.shape == (8, 32)
    assert jnp.allclose(out, _reference(x, adj, w, b), atol=1e-5, rtol=1e-5)

    # Case 2: multi-tile k reduction with a ragged (masked) adj column tile,
    # partial row tiles, resident M, no bias.
    x, adj, w, b = make_case(k2, 200, 16, 32, with_bias=False)
    out = jax.block_until_ready(
        graph_convolution(x, adj, w, b, tile_n=64, tile_k=128))
    assert out.shape == (200, 32)
    assert jnp.allclose(out, _reference(x, adj, w, b), atol=1e-4, rtol=1e-4)

    # Case 3: F_in > F_out -> support = X @ W hoisted out of the kernel.
    x, adj, w, b = make_case(k3, 40, 48, 24, with_bias=True)
    out = jax.block_until_ready(graph_convolution(x, adj, w, b))
    assert out.shape == (40, 24)
    assert jnp.allclose(out, _reference(x, adj, w, b), atol=1e-5, rtol=1e-5)

    # Case 4: force the streamed (non-resident) M strip path.
    x, adj, w, b = make_case(k4, 256, 32, 32, with_bias=True)
    out = jax.block_until_ready(
        graph_convolution(x, adj, w, b, tile_k=128, m_resident_max_bytes=0))
    assert out.shape == (256, 32)
    assert jnp.allclose(out, _reference(x, adj, w, b), atol=1e-4, rtol=1e-4)

    # Case 5: bf16 adjacency knob (halves adj HBM traffic); loose tolerance.
    x, adj, w, b = make_case(k5, 200, 16, 32, with_bias=True)
    out = jax.block_until_ready(
        graph_convolution(x, adj.astype(jnp.bfloat16), w, b, tile_k=128))
    assert out.shape == (200, 32)
    assert jnp.allclose(out, _reference(x, adj, w, b), atol=1e-2, rtol=1e-1)

    print("KERNEL_OK")
</pallas_src>

<mosaic_0001>
module attributes {stable_mosaic.version = 11 : i64} {
  func.func @kernel(%arg0: i32, %arg1: i32, %arg2: memref<8x8xf32, #tpu.memory_space<vmem>>, %arg3: memref<8x128xf32, #tpu.memory_space<vmem>>, %arg4: memref<128x128xf32, #tpu.memory_space<vmem>>, %arg5: memref<1x128xf32, #tpu.memory_space<vmem>>, %arg6: memref<8x128xf32, #tpu.memory_space<vmem>>, %arg7: memref<8x128xf32, #tpu.memory_space<vmem>>) attributes {dimension_semantics = [#tpu.dimension_semantics<parallel>, #tpu.dimension_semantics<arbitrary>], iteration_bounds = array<i64: 1, 1>, scalar_prefetch = 0 : i64, scratch_operands = 1 : i64, tpu.core_type = #tpu.core_type<tc>, window_params = [{transform_indices = @transform_0, window_bounds = array<i64: 8, 8>}, {pipeline_mode = #tpu.pipeline_mode<synchronous>, transform_indices = @transform_1, window_bounds = array<i64: 8, 128>}, {pipeline_mode = #tpu.pipeline_mode<synchronous>, transform_indices = @transform_2, window_bounds = array<i64: 128, 128>}, {pipeline_mode = #tpu.pipeline_mode<synchronous>, transform_indices = @transform_3, window_bounds = array<i64: 1, 128>}, {transform_indices = @transform_4, window_bounds = array<i64: 8, 128>}]} {
    %c0_i32 = arith.constant 0 : i32
    %0 = arith.cmpi eq, %arg1, %c0_i32 : i32
    %1 = arith.extui %0 : i1 to i32
    %c0_i32_0 = arith.constant 0 : i32
    %2 = arith.cmpi ne, %1, %c0_i32_0 : i32
    scf.if %2 {
      %cst_9 = arith.constant 0.000000e+00 : f32
      %15 = vector.broadcast %cst_9 : f32 to vector<8x128xf32>
      %c0_10 = arith.constant 0 : index
      %c0_11 = arith.constant 0 : index
      %16 = vector.load %arg7[%c0_10, %c0_11] : memref<8x128xf32, #tpu.memory_space<vmem>>, vector<8x128xf32>
      tpu.vector_store %arg7[%c0_10, %c0_11], %15 {strides = array<i32>} : memref<8x128xf32, #tpu.memory_space<vmem>>, vector<8x128xf32>,
    } else {
    }
    %c0 = arith.constant 0 : index
    %c0_1 = arith.constant 0 : index
    %3 = vector.load %arg2[%c0, %c0_1] : memref<8x8xf32, #tpu.memory_space<vmem>>, vector<8x8xf32>
    %c8_i32 = arith.constant 8 : i32
    %4 = arith.muli %arg1, %c8_i32 : i32
    %5 = tpu.assume_multiple %4, 8 : i32
    %6 = arith.index_cast %5 : i32 to index
    %c0_2 = arith.constant 0 : index
    %7 = vector.load %arg3[%6, %c0_2] : memref<8x128xf32, #tpu.memory_space<vmem>>, vector<8x128xf32>
    %c0_3 = arith.constant 0 : index
    %c0_4 = arith.constant 0 : index
    %8 = vector.load %arg7[%c0_3, %c0_4] : memref<8x128xf32, #tpu.memory_space<vmem>>, vector<8x128xf32>
    %cst = arith.constant dense<0.000000e+00> : vector<8x128xf32>
    %9 = tpu.matmul %3, %7, %cst {dimension_numbers = #tpu.dot_dimension_numbers<[1], [0], [0], [1], [0, 0, 1, 1], [], []>} : vector<8x8xf32>, vector<8x128xf32>, vector<8x128xf32> -> vector<8x128xf32>
    %10 = arith.addf %8, %9 : vector<8x128xf32>
    %c0_5 = arith.constant 0 : index
    %c0_6 = arith.constant 0 : index
    %11 = vector.load %arg7[%c0_5, %c0_6] : memref<8x128xf32, #tpu.memory_space<vmem>>, vector<8x128xf32>
    tpu.vector_store %arg7[%c0_5, %c0_6], %10 {strides = array<i32>} : memref<8x128xf32, #tpu.memory_space<vmem>>, vector<8x128xf32>,
    %c0_i32_7 = arith.constant 0 : i32
    %12 = arith.cmpi eq, %arg1, %c0_i32_7 : i32
    %13 = arith.extui %12 : i1 to i32
    %c0_i32_8 = arith.constant 0 : i32
    %14 = arith.cmpi ne, %13, %c0_i32_8 : i32
    scf.if %14 {
      %c0_9 = arith.constant 0 : index
      %c0_10 = arith.constant 0 : index
      %15 = vector.load %arg7[%c0_9, %c0_10] : memref<8x128xf32, #tpu.memory_space<vmem>>, vector<8x128xf32>
      %c0_11 = arith.constant 0 : index
      %c0_12 = arith.constant 0 : index
      %16 = vector.load %arg4[%c0_11, %c0_12] : memref<128x128xf32, #tpu.memory_space<vmem>>, vector<128x128xf32>
      %cst_13 = arith.constant dense<0.000000e+00> : vector<8x128xf32>
      %17 = tpu.matmul %15, %16, %cst_13 {dimension_numbers = #tpu.dot_dimension_numbers<[1], [0], [0], [1], [0, 0, 1, 1], [], []>} : vector<8x128xf32>, vector<128x128xf32>, vector<8x128xf32> -> vector<8x128xf32>
      %c0_14 = arith.constant 0 : index
      %c0_15 = arith.constant 0 : index
      %18 = vector.load %arg5[%c0_14, %c0_15] : memref<1x128xf32, #tpu.memory_space<vmem>>, vector<1x128xf32>
      %19 = vector.broadcast %18 : vector<1x128xf32> to vector<8x128xf32>
      %20 = arith.addf %17, %19 : vector<8x128xf32>
      %c0_16 = arith.constant 0 : index
      %c0_17 = arith.constant 0 : index
      %21 = vector.load %arg6[%c0_16, %c0_17] : memref<8x128xf32, #tpu.memory_space<vmem>>, vector<8x128xf32>
      tpu.vector_store %arg6[%c0_16, %c0_17], %20 {strides = array<i32>} : memref<8x128xf32, #tpu.memory_space<vmem>>, vector<8x128xf32>,
    } else {
    }
    return
  }
  func.func @transform_0(%arg0: i32, %arg1: i32) -> (i32, i32) {
    %c0_i32 = arith.constant 0 : i32
    return %arg0, %arg1 : i32, i32
  }
  func.func @transform_1(%arg0: i32, %arg1: i32) -> (i32, i32) {
    %c0_i32 = arith.constant 0 : i32
    %c0_i32_0 = arith.constant 0 : i32
    %c0_i32_1 = arith.constant 0 : i32
    return %c0_i32, %c0_i32_0 : i32, i32
  }
  func.func @transform_2(%arg0: i32, %arg1: i32) -> (i32, i32) {
    %c0_i32 = arith.constant 0 : i32
    %c0_i32_0 = arith.constant 0 : i32
    %c0_i32_1 = arith.constant 0 : i32
    return %c0_i32, %c0_i32_0 : i32, i32
  }
  func.func @transform_3(%arg0: i32, %arg1: i32) -> (i32, i32) {
    %c0_i32 = arith.constant 0 : i32
    %c0_i32_0 = arith.constant 0 : i32
    %c0_i32_1 = arith.constant 0 : i32
    return %c0_i32, %c0_i32_0 : i32, i32
  }
  func.func @transform_4(%arg0: i32, %arg1: i32) -> (i32, i32) {
    %c0_i32 = arith.constant 0 : i32
    %c0_i32_0 = arith.constant 0 : i32
    return %arg0, %c0_i32 : i32, i32
  }
}

</mosaic_0001>

<llo_original>
// kernel: tpu_custom_call.1
$region0: #{tpu_custom_call.1}
  #allocation0 [shape = 'u32[]', space=smem, size = 0x4, offset = 0x4, fixed_abs, tag = 'smem constant byte address 0x4 - core index']
  #allocation1 [shape = 'u32[72,128]{1,0:T(1,128)}', space=vmem, size = 0x9000, scoped, tag = 'internal scratch']
  #allocation2 [shape = 'f32[8,128]{1,0:T(8,128)}', space=vmem, size = 0x1000, scoped, tag = 'scratch operand']
  %s0 = inlined_call_operand.hbm [shape: f32[8,8], index: 0, kind: input, shape index: {}]
  %s1 = inlined_call_operand.hbm [shape: f32[8,128], index: 1, kind: input, shape index: {}]
  %s2 = inlined_call_operand.hbm [shape: f32[128,128], index: 2, kind: input, shape index: {}]
  %s3 = inlined_call_operand.vmem [shape: f32[1,128], index: 3, kind: input, shape index: {}]
  %s4 = inlined_call_operand.hbm [shape: f32[8,128], index: 4, kind: output, shape index: {}]
  %s5 = sld [smem:[#allocation0]]
  $region46: #{tpu_custom_call.1} parent=0
    _
  %s7 = ssub.s32 1, %s5
  %s8 = scalar_select 0, %s7, %s5
  $region1: #{tpu_custom_call.1} parent=0
    #allocation3 [shape = 'u8[4096]{0}', space=vmem, size = 0x1000, scoped, tag = 'input window, operand 0, single buffered']
    #allocation4 [shape = 's32[1]{0}', space=sflag, size = 0x4, scoped, tag = 'scoped memory for tpu_custom_call.1']
    #allocation5 [shape = 's32[1]{0}', space=sflag, size = 0x4, scoped, tag = 'scoped memory for tpu_custom_call.1']
    #allocation6 [shape = 'u8[4096]{0}', space=vmem, size = 0x1000, scoped, tag = 'input window, operand 1, single buffered']
    #allocation7 [shape = 's32[1]{0}', space=sflag, size = 0x4, scoped, tag = 'scoped memory for tpu_custom_call.1']
    #allocation8 [shape = 'u8[65536]{0}', space=vmem, size = 0x10000, scoped, tag = 'input window, operand 2, single buffered']
    #allocation9 [shape = 'u8[4096]{0}', space=vmem, size = 0x1000, scoped, tag = 'output window, operand 0, single buffered']
    %9 = vsyncpa [#allocation4], 0
    %10 = vsyncpa [#allocation7], 0
    %11 = vsyncpa [#allocation5], 0
    // Predicated region
    $region2: #{tpu_custom_call.1} parent=1 // pred_check
      _
    $region3: #{tpu_custom_call.1} parent=1 // pred_check_branch
      %13 = sbr.rel (0) target = $region5
    $region4: #{tpu_custom_call.1} parent=1 // pred_region
      %15 = vsyncadd [#allocation4], 0
      %s17 = sshll.u32 %s0, 4
      %s18 = int_to_ptr.hbm [resolvable:$true] %s17
      %s19 = sshll.u32 [#allocation3], 4
      %s20 = int_to_ptr.vmem [resolvable:$true] %s19
      %22 = dma.hbm_to_vmem [thread:$0]  %s18, 128, %s20, [#allocation4]
    $region5: #{tpu_custom_call.1} parent=1 // pred_fallthru
      _
    // Predicated region
    $region6: #{tpu_custom_call.1} parent=1 // pred_check
      _
    $region7: #{tpu_custom_call.1} parent=1 // pred_check_branch
      %24 = sbr.rel (0) target = $region9
    $region8: #{tpu_custom_call.1} parent=1 // pred_region
      %26 = vsyncadd [#allocation7], 0
      %s28 = sshll.u32 %s1, 4
      %s29 = int_to_ptr.hbm [resolvable:$true] %s28
      %s30 = sshll.u32 [#allocation6], 4
      %s31 = int_to_ptr.vmem [resolvable:$true] %s30
      %33 = dma.hbm_to_vmem [thread:$0]  %s29, 128, %s31, [#allocation7]
    $region9: #{tpu_custom_call.1} parent=1 // pred_fallthru
      _
    // Predicated region
    $region10: #{tpu_custom_call.1} parent=1 // pred_check
      _
    $region11: #{tpu_custom_call.1} parent=1 // pred_check_branch
      %35 = sbr.rel (0) target = $region13
    $region12: #{tpu_custom_call.1} parent=1 // pred_region
      %37 = vsyncadd [#allocation7], 0
      %s38 = sshll.u32 %s2, 4
      %s39 = int_to_ptr.hbm [resolvable:$true] %s38
      %s40 = sshll.u32 [#allocation8], 4
      %s41 = int_to_ptr.vmem [resolvable:$true] %s40
      %46 = dma.hbm_to_vmem [thread:$0]  %s39, 2048, %s41, [#allocation7], 128, 128, 8
    $region13: #{tpu_custom_call.1} parent=1 // pred_fallthru
      _
    // Predicated region
    $region14: #{tpu_custom_call.1} parent=1 // pred_check
      _
    $region15: #{tpu_custom_call.1} parent=1 // pred_check_branch
      %48 = sbr.rel (0) target = $region17
    $region16: #{tpu_custom_call.1} parent=1 // pred_region
      _
    $region17: #{tpu_custom_call.1} parent=1 // pred_fallthru
      _
    // Predicated region
    $region18: #{tpu_custom_call.1} parent=1 // pred_check
      _
    $region19: #{tpu_custom_call.1} parent=1 // pred_check_branch
      %50 = sbr.rel (0) target = $region21
    $region20: #{tpu_custom_call.1} parent=1 // pred_region
      %52 = dma.done [#allocation4], 128
    $region21: #{tpu_custom_call.1} parent=1 // pred_fallthru
      _
    // Predicated region
    $region22: #{tpu_custom_call.1} parent=1 // pred_check
      _
    $region23: #{tpu_custom_call.1} parent=1 // pred_check_branch
      %54 = sbr.rel (0) target = $region25
    $region24: #{tpu_custom_call.1} parent=1 // pred_region
      %56 = dma.done [#allocation7], 128
    $region25: #{tpu_custom_call.1} parent=1 // pred_fallthru
      _
    // Predicated region
    $region26: #{tpu_custom_call.1} parent=1 // pred_check
      _
    $region27: #{tpu_custom_call.1} parent=1 // pred_check_branch
      %58 = sbr.rel (0) target = $region29
    $region28: #{tpu_custom_call.1} parent=1 // pred_region
      %60 = dma.done [#allocation7], 2048
    $region29: #{tpu_custom_call.1} parent=1 // pred_fallthru
      _
    %p61 = scmp.eq.s32.totalorder 0, 0
    // Predicated region
    $region30: #{tpu_custom_call.1} parent=1 // pred_check
      %p62 = pneg %p61
    $region31: #{tpu_custom_call.1} parent=1 // pred_check_branch
      %64 = sbr.rel (%p62) target = $region33
    $region32: #{tpu_custom_call.1} parent=1 // pred_region
      %65 = vst [vmem:[#allocation2] sm:$0xff] 0.0
    $region33: #{tpu_custom_call.1} parent=1 // pred_fallthru
      _
    %v66 = vld [vmem:[#allocation3] sm:$0xff]
    %s67 = smul.u32 0, 8
    %s68 = scalar_lea.vmem [#allocation6], %s67
    %v69 = vld [vmem:[%s68] sm:$0xff]
    %v70 = vld [vmem:[#allocation2] sm:$0xff]
    %vm71 = vcmask 64512
    %v73 = vsel %vm71, %v66, 0
    %75 = vmatpush.msra.mxu0 0.0
    %76 = vmatpush.msra.mxu0 0.0
    %77 = vmatpush.msra.mxu0 0.0
    %78 = vmatpush.msra.mxu0 0.0
    %79 = vmatpush.msra.mxu0 0.0
    %80 = vmatpush.msra.mxu0 0.0
    %81 = vmatpush.msra.mxu0 0.0
    %82 = vmatpush.msra.mxu0 0.0
    %83 = vmatpush.msra.mxu0 0.0
    %84 = vmatpush.msra.mxu0 0.0
    %85 = vmatpush.msra.mxu0 0.0
    %86 = vmatpush.msra.mxu0 0.0
    %87 = vmatpush.msra.mxu0 0.0
    %88 = vmatpush.msra.mxu0 0.0
    %89 = vmatpush.msra.mxu0 0.0
    %90 = vmatpush.msra.mxu0 %v69
    %91 = vmatmul.f32.gmra.mxu0 %v73
    %v92 = vpop.f32.mrf.mxu0
    %v93 = vadd.f32 0.0, %v92
    %94 = vdwg.mxu0
    %v95 = vadd.f32 %v70, %v93
    %96 = vst [vmem:[#allocation2] sm:$0xff] %v95
    // Predicated region
    $region34: #{tpu_custom_call.1} parent=1 // pred_check
      %p97 = pneg %p61
    $region35: #{tpu_custom_call.1} parent=1 // pred_check_branch
      %99 = sbr.rel (%p97) target = $region37
    $region36: #{tpu_custom_call.1} parent=1 // pred_region
      %v100 = vld [vmem:[#allocation2] sm:$0xff]
      %v101 = vld [vmem:[#allocation8] sm:$0xff]
      %v102 = vld [vmem:[#allocation8 + $0x8] sm:$0xff]
      %v103 = vld [vmem:[#allocation8 + $0x10] sm:$0xff]
      %v104 = vld [vmem:[#allocation8 + $0x18] sm:$0xff]
      %v105 = vld [vmem:[#allocation8 + $0x20] sm:$0xff]
      %v106 = vld [vmem:[#allocation8 + $0x28] sm:$0xff]
      %v107 = vld [vmem:[#allocation8 + $0x30] sm:$0xff]
      %v108 = vld [vmem:[#allocation8 + $0x38] sm:$0xff]
      %v109 = vld [vmem:[#allocation8 + $0x40] sm:$0xff]
      %v110 = vld [vmem:[#allocation8 + $0x48] sm:$0xff]
      %v111 = vld [vmem:[#allocation8 + $0x50] sm:$0xff]
      %v112 = vld [vmem:[#allocation8 + $0x58] sm:$0xff]
      %v113 = vld [vmem:[#allocation8 + $0x60] sm:$0xff]
      %v114 = vld [vmem:[#allocation8 + $0x68] sm:$0xff]
      %v115 = vld [vmem:[#allocation8 + $0x70] sm:$0xff]
      %v116 = vld [vmem:[#allocation8 + $0x78] sm:$0xff]
      %v117 = vld [vmem:[%s3] sm:$0x1]
      %v119 = vperm.slane %v117, 0
      %121 = vmatpush.msra.mxu0 %v116
      %122 = vmatpush.msra.mxu0 %v115
      %123 = vmatpush.msra.mxu0 %v114
      %124 = vmatpush.msra.mxu0 %v113
      %125 = vmatpush.msra.mxu0 %v112
      %126 = vmatpush.msra.mxu0 %v111
      %127 = vmatpush.msra.mxu0 %v110
      %128 = vmatpush.msra.mxu0 %v109
      %129 = vmatpush.msra.mxu0 %v108
      %130 = vmatpush.msra.mxu0 %v107
      %131 = vmatpush.msra.mxu0 %v106
      %132 = vmatpush.msra.mxu0 %v105
      %133 = vmatpush.msra.mxu0 %v104
      %134 = vmatpush.msra.mxu0 %v103
      %135 = vmatpush.msra.mxu0 %v102
      %136 = vmatpush.msra.mxu0 %v101
      %137 = vmatmul.f32.gmra.mxu0 %v100
      %v138 = vpop.f32.mrf.mxu0
      %v139 = vadd.f32 %v119, %v138
      %140 = vdwg.mxu0
      %141 = vst [vmem:[#allocation9] sm:$0xff] %v139
    $region37: #{tpu_custom_call.1} parent=1 // pred_fallthru
      _
    // Predicated region
    $region38: #{tpu_custom_call.1} parent=1 // pred_check
      _
    $region39: #{tpu_custom_call.1} parent=1 // pred_check_branch
      %143 = sbr.rel (0) target = $region41
    $region40: #{tpu_custom_call.1} parent=1 // pred_region
      %145 = vsyncadd [#allocation5], 0
      %s147 = sshll.u32 [#allocation9], 4
      %s148 = int_to_ptr.vmem [resolvable:$true] %s147
      %s149 = sshll.u32 %s4, 4
      %s150 = int_to_ptr.hbm [resolvable:$true] %s149
      %152 = dma.vmem_to_hbm [thread:$0]  %s148, 128, %s150, [#allocation5]
    $region41: #{tpu_custom_call.1} parent=1 // pred_fallthru
      _
    // Predicated region
    $region42: #{tpu_custom_call.1} parent=1 // pred_check
      _
    $region43: #{tpu_custom_call.1} parent=1 // pred_check_branch
      %154 = sbr.rel (0) target = $region45
    $region44: #{tpu_custom_call.1} parent=1 // pred_region
      %156 = dma.done [#allocation5], 128
    $region45: #{tpu_custom_call.1} parent=1 // pred_fallthru
      _
    %157 = vsyncpa [#allocation4], 1
    %158 = vsyncpa [#allocation7], 1
    %159 = vsyncpa [#allocation5], 1

</llo_original>
